<compile_context>
chip_gen: v7x
topology: tpu7x:2x2x1
jax: 0.10.0
libtpu: 0.0.40
codegen_flags: <defaults>
</compile_context>

<pallas_src>
import numpy as np
import jax
import jax.numpy as jnp
from jax.experimental import pallas as pl
from jax.experimental.pallas import tpu as pltpu

_EPS = 1e-5

_ACTS = {
    "relu": lambda x: jnp.maximum(x, 0.0),
    "sigmoid": jax.nn.sigmoid,
    "tanh": jnp.tanh,
}


# ---------------------------------------------------------------------------
# Masks (same semantics as tools/flows.py::get_mask)
# ---------------------------------------------------------------------------
def get_mask(in_features, out_features, in_flow_features, mask_type=None):
    if mask_type == "input":
        in_degrees = np.arange(in_features) % in_flow_features
    else:
        in_degrees = np.arange(in_features) % (in_flow_features - 1)
    if mask_type == "output":
        out_degrees = np.arange(out_features) % in_flow_features - 1
    else:
        out_degrees = np.arange(out_features) % (in_flow_features - 1)
    return (out_degrees[:, None] >= in_degrees[None, :]).astype(np.float32)


# ---------------------------------------------------------------------------
# Per-block kernel body (one grid step == one [MADE + BatchNorm] block;
# Reverse layers were folded into the packed weights).
# ---------------------------------------------------------------------------
def _make_kernel(nb, D, Dp, act, use_cond, mm_dtype, inv_b):
    act_fn = _ACTS[act]

    def kernel(*refs):
        if use_cond:
            (x_ref, hc_ref, w1_ref, b1_ref, w2_ref, b2_ref, wo_ref, bo_ref,
             gamma_ref, lg_ref, beta_ref,
             y_ref, ld_ref,
             x_carry, a_acc, bn_acc) = refs
        else:
            (x_ref, w1_ref, b1_ref, w2_ref, b2_ref, wo_ref, bo_ref,
             gamma_ref, lg_ref, beta_ref,
             y_ref, ld_ref,
             x_carry, a_acc, bn_acc) = refs

        i = pl.program_id(0)

        @pl.when(i == 0)
        def _init():
            x_carry[...] = x_ref[...]
            a_acc[...] = jnp.zeros_like(a_acc)
            bn_acc[...] = jnp.zeros_like(bn_acc)

        x = x_carry[...]                                   # (B, D) f32

        # ---- MADE joiner: masked linear (+ hoisted conditional slice) ----
        h = jnp.dot(x.astype(mm_dtype), w1_ref[0],
                    preferred_element_type=jnp.float32) + b1_ref[0]
        if use_cond:
            h = h + hc_ref[0]                              # precomputed cond@Wc
        # ---- MADE trunk: act -> masked linear -> act -> fused (m|a) head ----
        h = act_fn(h)
        h = jnp.dot(h.astype(mm_dtype), w2_ref[0],
                    preferred_element_type=jnp.float32) + b2_ref[0]
        h = act_fn(h)
        out = jnp.dot(h.astype(mm_dtype), wo_ref[0],
                      preferred_element_type=jnp.float32) + bo_ref[0]
        m = out[:, :D]                                     # lane-aligned split
        a = out[:, Dp:Dp + D]

        u = (x - m) * jnp.exp(-a)
        a_acc[...] += a                                    # deferred lane reduce

        # ---- BatchNormFlow (training mode, one-pass batch statistics) ----
        s1 = jnp.sum(u, axis=0, keepdims=True)             # (1, D)
        s2 = jnp.sum(u * u, axis=0, keepdims=True)
        mean = s1 * inv_b
        var = s2 * inv_b - mean * mean + _EPS
        x_hat = (u - mean) * jax.lax.rsqrt(var)
        y = gamma_ref[0] * x_hat + beta_ref[0]             # gamma = exp(lg), packed
        bn_acc[...] += lg_ref[0] - 0.5 * jnp.log(var)      # deferred lane reduce

        x_carry[...] = y

        @pl.when(i == nb - 1)
        def _fin():
            y_ref[...] = y
            ld_ref[...] = (jnp.sum(bn_acc[...], axis=-1, keepdims=True)
                           - jnp.sum(a_acc[...], axis=-1, keepdims=True))

    return kernel


def maf_forward(x, cond, packed, act="relu"):
    """Fused MAF forward (direct mode, training-mode BatchNorm)."""
    B, D = x.shape
    nb = int(packed["w1"].shape[0])
    H = int(packed["w1"].shape[2])
    Dp = int(packed["d_pad"])
    use_cond = cond is not None
    if use_cond and packed["wc"] is None:
        raise ValueError("cond_inputs given but params were built without "
                         "num_cond_inputs")

    mm_dtype = packed["w1"].dtype
    kernel = _make_kernel(nb, D, Dp, act, use_cond, mm_dtype, 1.0 / B)

    def stacked(*shape):   # one block per grid step, pipelined / double-buffered
        return pl.BlockSpec((1,) + shape, lambda i: (i,) + (0,) * len(shape))

    def whole(*shape):     # constant block index -> DMA'd once, stays resident
        return pl.BlockSpec(shape, lambda i: (0,) * len(shape))

    args = [x]
    in_specs = [whole(B, D)]
    if use_cond:
        # Hoisted conditional path: one wide lane-dense matmul outside the
        # kernel; its per-block (B, H) slice is pipelined like a weight.
        hc = jnp.einsum("bc,nch->nbh", cond.astype(jnp.float32),
                        packed["wc"].astype(jnp.float32))
        args.append(hc)
        in_specs.append(stacked(B, H))
    for name, shape in (("w1", (D, H)), ("b1", (1, H)),
                        ("w2", (H, H)), ("b2", (1, H)),
                        ("wo", (H, 2 * Dp)), ("bo", (1, 2 * Dp)),
                        ("gamma", (1, D)), ("log_gamma", (1, D)),
                        ("beta", (1, D))):
        args.append(packed[name])
        in_specs.append(stacked(*shape))

    # VMEM budget: ~double-buffered per-block inputs + activations + slack,
    # clamped to [32 MiB, 48 MiB] so v7x (64 MiB physical) keeps headroom.
    blk_bytes = sum(int(np.prod(a.shape[1:])) * a.dtype.itemsize
                    for a in args if a.ndim == 3)
    act_bytes = (4 * B * D + 2 * B * H + 2 * B * Dp) * 4
    vmem_limit = int(min(48 * 1024 * 1024,
                         max(32 * 1024 * 1024,
                             4 * blk_bytes + 4 * act_bytes + (4 << 20))))

    grid_spec = pltpu.PrefetchScalarGridSpec(
        num_scalar_prefetch=0,
        grid=(nb,),
        in_specs=in_specs,
        out_specs=(pl.BlockSpec((B, D), lambda i: (0, 0)),
                   pl.BlockSpec((B, 1), lambda i: (0, 0))),
        scratch_shapes=[pltpu.VMEM((B, D), jnp.float32),   # carried activation
                        pltpu.VMEM((B, D), jnp.float32),   # a accumulator
                        pltpu.VMEM((1, D), jnp.float32)],  # BN logdet accumulator
    )

    y, ld = pl.pallas_call(
        kernel,
        out_shape=(jax.ShapeDtypeStruct((B, D), jnp.float32),
                   jax.ShapeDtypeStruct((B, 1), jnp.float32)),
        grid_spec=grid_spec,
        compiler_params=pltpu.CompilerParams(
            dimension_semantics=("arbitrary",),   # sequential carry over blocks
            vmem_limit_bytes=vmem_limit),
    )(*args)

    # All intermediate Reverse layers were folded into the weights; only the
    # overall output permutation (reverse^num_blocks) remains for odd nb.
    if nb % 2 == 1:
        # TODO(synk): fold into the kernel's final store once a lane-reverse
        # lowering is guaranteed; kept in XLA for robustness.
        y = y[:, ::-1]
    return y, ld


# ---------------------------------------------------------------------------
# Parameter init (orthogonal Linear weights, zero biases, zero
# log_gamma / beta -- matching MAF.__init__ semantics) and packing
# (Reverse-folding + lane-aligned head + per-block stacking).
# ---------------------------------------------------------------------------
def _orthogonal(key, out_f, in_f):
    n = max(out_f, in_f)
    a = jax.random.normal(key, (n, n), jnp.float32)
    q, r = jnp.linalg.qr(a)
    q = q * jnp.sign(jnp.diagonal(r))
    return q[:out_f, :in_f]


def init_maf_params(key, num_inputs, num_cond_inputs, num_hidden, num_blocks):
    D, C, H = num_inputs, num_cond_inputs, num_hidden
    input_mask = jnp.asarray(get_mask(D, H, D, mask_type="input"))       # (H, D)
    hidden_mask = jnp.asarray(get_mask(H, H, D))                          # (H, H)
    output_mask = jnp.asarray(get_mask(H, 2 * D, D, mask_type="output"))  # (2D, H)

    params = []
    for _ in range(num_blocks):
        key, k1, k2, k3, kc = jax.random.split(key, 5)
        W1 = _orthogonal(k1, H, D) * input_mask
        W2 = _orthogonal(k2, H, H) * hidden_mask
        W3 = _orthogonal(k3, 2 * D, H) * output_mask
        params.append(dict(
            w1=W1.T,                      # (D, H)  pre-masked, pre-transposed
            b1=jnp.zeros((1, H), jnp.float32),
            wc=(_orthogonal(kc, H, C).T if C is not None else None),  # (C, H)
            w2=W2.T,                      # (H, H)
            b2=jnp.zeros((1, H), jnp.float32),
            wm=W3[:D].T,                  # (H, D)  m half
            bm=jnp.zeros((1, D), jnp.float32),
            wa=W3[D:].T,                  # (H, D)  a half
            ba=jnp.zeros((1, D), jnp.float32),
            log_gamma=jnp.zeros((1, D), jnp.float32),
            beta=jnp.zeros((1, D), jnp.float32),
        ))
    return params


def pack_params(params, mm_dtype=jnp.bfloat16):
    """Fold the Reverse permutations into the weights, lane-align the (m|a)
    head, precompute gamma = exp(log_gamma), and stack per-block params along
    a leading axis for the block-gridded kernel.

    bf16 weights (default) halve weight DMA / VMEM and feed the MXU at native
    rate on v5e/v6e/v7x; elementwise math stays f32 in the kernel.  For real
    MAF configs prefer H (and ideally D) as multiples of 128 so matmuls and
    vregs are lane-dense."""
    nb = len(params)
    D = int(params[0]["w1"].shape[0])
    H = int(params[0]["w1"].shape[1])
    Dp = -(-D // 128) * 128                    # m-half padded to a lane tile
    pad = Dp - D

    w1s, b1s, wcs, w2s, b2s, wos, bos, gs, lgs, betas = ([] for _ in range(10))
    for i, p in enumerate(params):
        flip = (i % 2 == 1)
        prow = (lambda w: w[::-1, :]) if flip else (lambda w: w)
        pcol = (lambda w: w[:, ::-1]) if flip else (lambda w: w)
        w1s.append(prow(p["w1"]).astype(mm_dtype))
        b1s.append(p["b1"])
        if p["wc"] is not None:
            wcs.append(p["wc"].astype(mm_dtype))
        w2s.append(p["w2"].astype(mm_dtype))
        b2s.append(p["b2"])
        zc = jnp.zeros((H, pad), jnp.float32)
        zb = jnp.zeros((1, pad), jnp.float32)
        wos.append(jnp.concatenate(
            [pcol(p["wm"]), zc, pcol(p["wa"]), zc], axis=1).astype(mm_dtype))
        bos.append(jnp.concatenate(
            [pcol(p["bm"]), zb, pcol(p["ba"]), zb], axis=1))   # (1, 2*Dp) f32
        gs.append(jnp.exp(pcol(p["log_gamma"])))
        lgs.append(pcol(p["log_gamma"]))
        betas.append(pcol(p["beta"]))
    return dict(
        w1=jnp.stack(w1s), b1=jnp.stack(b1s),
        wc=(jnp.stack(wcs) if wcs else None),
        w2=jnp.stack(w2s), b2=jnp.stack(b2s),
        wo=jnp.stack(wos), bo=jnp.stack(bos),
        gamma=jnp.stack(gs), log_gamma=jnp.stack(lgs), beta=jnp.stack(betas),
        d_pad=Dp,
    )


# ---------------------------------------------------------------------------
# Pure-JAX reference (literal translation of the PyTorch forward) for checking
# ---------------------------------------------------------------------------
def maf_forward_ref(x, cond, params, act="relu"):
    act_fn = _ACTS[act]
    B = x.shape[0]
    ld = jnp.zeros((B, 1), jnp.float32)
    for p in params:
        h = x @ p["w1"] + p["b1"]
        if cond is not None and p["wc"] is not None:
            h = h + cond @ p["wc"]
        h = act_fn(h)
        h = act_fn(h @ p["w2"] + p["b2"])
        m = h @ p["wm"] + p["bm"]
        a = h @ p["wa"] + p["ba"]
        u = (x - m) * jnp.exp(-a)
        ld = ld - jnp.sum(a, axis=-1, keepdims=True)
        mean = jnp.mean(u, axis=0, keepdims=True)
        var = jnp.mean((u - mean) ** 2, axis=0, keepdims=True) + _EPS
        y = jnp.exp(p["log_gamma"]) * (u - mean) / jnp.sqrt(var) + p["beta"]
        ld = ld + jnp.sum(p["log_gamma"] - 0.5 * jnp.log(var),
                          axis=-1, keepdims=True)
        x = y[:, ::-1]                 # Reverse layer (logdet = 0)
    return x, ld


if __name__ == "__main__":
    B, D, C, H, NUM_BLOCKS = 16, 8, 4, 32, 3
    key = jax.random.PRNGKey(0)
    kx, kc, kp = jax.random.split(key, 3)

    x = jax.random.normal(kx, (B, D), jnp.float32)
    cond = jax.random.normal(kc, (B, C), jnp.float32)
    params = init_maf_params(kp, D, C, H, NUM_BLOCKS)

    y_ref, ld_ref = maf_forward_ref(x, cond, params, act="relu")

    # ---- f32-weight path (bit-faithful to the PyTorch module) ----
    packed32 = pack_params(params, mm_dtype=jnp.float32)
    fwd32 = jax.jit(lambda xx, cc: maf_forward(xx, cc, packed32, act="relu"))
    y32, ld32 = fwd32(x, cond)
    jax.block_until_ready((y32, ld32))
    assert y32.shape == (B, D) and ld32.shape == (B, 1)
    assert not bool(jnp.isnan(y32).any()) and not bool(jnp.isnan(ld32).any())
    np.testing.assert_allclose(np.asarray(y32), np.asarray(y_ref),
                               rtol=1e-4, atol=1e-4)
    np.testing.assert_allclose(np.asarray(ld32), np.asarray(ld_ref),
                               rtol=1e-4, atol=1e-4)

    # ---- default bf16-weight path (MXU-native on all generations) ----
    packed_bf16 = pack_params(params)            # mm_dtype defaults to bf16
    fwd16 = jax.jit(lambda xx, cc: maf_forward(xx, cc, packed_bf16, act="relu"))
    y16, ld16 = fwd16(x, cond)
    jax.block_until_ready((y16, ld16))
    assert bool(jnp.isfinite(y16).all()) and bool(jnp.isfinite(ld16).all())
    # Coarse sanity bounds for bf16 matmul precision (elementwise math is f32).
    np.testing.assert_allclose(np.asarray(y16), np.asarray(y_ref),
                               rtol=0.3, atol=0.3)
    np.testing.assert_allclose(np.asarray(ld16), np.asarray(ld_ref),
                               rtol=0.3, atol=0.5)

    print("KERNEL_OK")
</pallas_src>

<mosaic_0001>
module attributes {stable_mosaic.version = 11 : i64} {
  func.func @kernel(%arg0: i32, %arg1: memref<16x8xf32, #tpu.memory_space<vmem>>, %arg2: memref<1x16x32xf32, #tpu.memory_space<vmem>>, %arg3: memref<1x8x32xf32, #tpu.memory_space<vmem>>, %arg4: memref<1x1x32xf32, #tpu.memory_space<vmem>>, %arg5: memref<1x32x32xf32, #tpu.memory_space<vmem>>, %arg6: memref<1x1x32xf32, #tpu.memory_space<vmem>>, %arg7: memref<1x32x256xf32, #tpu.memory_space<vmem>>, %arg8: memref<1x1x256xf32, #tpu.memory_space<vmem>>, %arg9: memref<1x1x8xf32, #tpu.memory_space<vmem>>, %arg10: memref<1x1x8xf32, #tpu.memory_space<vmem>>, %arg11: memref<1x1x8xf32, #tpu.memory_space<vmem>>, %arg12: memref<16x8xf32, #tpu.memory_space<vmem>>, %arg13: memref<16x1xf32, #tpu.memory_space<vmem>>, %arg14: memref<16x8xf32, #tpu.memory_space<vmem>>, %arg15: memref<16x8xf32, #tpu.memory_space<vmem>>, %arg16: memref<1x8xf32, #tpu.memory_space<vmem>>) attributes {dimension_semantics = [#tpu.dimension_semantics<arbitrary>], iteration_bounds = array<i64: 3>, scalar_prefetch = 0 : i64, scratch_operands = 3 : i64, tpu.core_type = #tpu.core_type<tc>, window_params = [{pipeline_mode = #tpu.pipeline_mode<synchronous>, transform_indices = @transform_0, window_bounds = array<i64: 16, 8>}, {transform_indices = @transform_1, window_bounds = array<i64: 1, 16, 32>}, {transform_indices = @transform_2, window_bounds = array<i64: 1, 8, 32>}, {transform_indices = @transform_3, window_bounds = array<i64: 1, 1, 32>}, {transform_indices = @transform_4, window_bounds = array<i64: 1, 32, 32>}, {transform_indices = @transform_5, window_bounds = array<i64: 1, 1, 32>}, {transform_indices = @transform_6, window_bounds = array<i64: 1, 32, 256>}, {transform_indices = @transform_7, window_bounds = array<i64: 1, 1, 256>}, {transform_indices = @transform_8, window_bounds = array<i64: 1, 1, 8>}, {transform_indices = @transform_9, window_bounds = array<i64: 1, 1, 8>}, {transform_indices = @transform_10, window_bounds = array<i64: 1, 1, 8>}, {pipeline_mode = #tpu.pipeline_mode<synchronous>, transform_indices = @transform_11, window_bounds = array<i64: 16, 8>}, {pipeline_mode = #tpu.pipeline_mode<synchronous>, transform_indices = @transform_12, window_bounds = array<i64: 16, 1>}]} {
    %c0_i32 = arith.constant 0 : i32
    %0 = arith.cmpi eq, %arg0, %c0_i32 : i32
    %1 = arith.extui %0 : i1 to i32
    %c0_i32_0 = arith.constant 0 : i32
    %2 = arith.cmpi ne, %1, %c0_i32_0 : i32
    scf.if %2 {
      %c0_54 = arith.constant 0 : index
      %c0_55 = arith.constant 0 : index
      %81 = vector.load %arg1[%c0_54, %c0_55] : memref<16x8xf32, #tpu.memory_space<vmem>>, vector<16x8xf32>
      %c0_56 = arith.constant 0 : index
      %c0_57 = arith.constant 0 : index
      %82 = vector.load %arg14[%c0_56, %c0_57] : memref<16x8xf32, #tpu.memory_space<vmem>>, vector<16x8xf32>
      tpu.vector_store %arg14[%c0_56, %c0_57], %81 {strides = array<i32>} : memref<16x8xf32, #tpu.memory_space<vmem>>, vector<16x8xf32>,
      %cst_58 = arith.constant 0.000000e+00 : f32
      %83 = vector.broadcast %cst_58 : f32 to vector<16x8xf32>
      %c0_59 = arith.constant 0 : index
      %c0_60 = arith.constant 0 : index
      %84 = vector.load %arg15[%c0_59, %c0_60] : memref<16x8xf32, #tpu.memory_space<vmem>>, vector<16x8xf32>
      tpu.vector_store %arg15[%c0_59, %c0_60], %83 {strides = array<i32>} : memref<16x8xf32, #tpu.memory_space<vmem>>, vector<16x8xf32>,
      %cst_61 = arith.constant 0.000000e+00 : f32
      %85 = vector.broadcast %cst_61 : f32 to vector<1x8xf32>
      %c0_62 = arith.constant 0 : index
      %c0_63 = arith.constant 0 : index
      %86 = vector.load %arg16[%c0_62, %c0_63] : memref<1x8xf32, #tpu.memory_space<vmem>>, vector<1x8xf32>
      tpu.vector_store %arg16[%c0_62, %c0_63], %85 {strides = array<i32>} : memref<1x8xf32, #tpu.memory_space<vmem>>, vector<1x8xf32>,
    } else {
    }
    %c0 = arith.constant 0 : index
    %c0_1 = arith.constant 0 : index
    %3 = vector.load %arg14[%c0, %c0_1] : memref<16x8xf32, #tpu.memory_space<vmem>>, vector<16x8xf32>
    %c0_2 = arith.constant 0 : index
    %c0_3 = arith.constant 0 : index
    %c0_4 = arith.constant 0 : index
    %4 = vector.load %arg3[%c0_2, %c0_3, %c0_4] : memref<1x8x32xf32, #tpu.memory_space<vmem>>, vector<1x8x32xf32>
    %5 = vector.shape_cast %4 : vector<1x8x32xf32> to vector<8x32xf32>
    %cst = arith.constant dense<0.000000e+00> : vector<16x32xf32>
    %6 = tpu.matmul %3, %5, %cst {dimension_numbers = #tpu.dot_dimension_numbers<[1], [0], [0], [1], [0, 0, 1, 1], [], []>} : vector<16x8xf32>, vector<8x32xf32>, vector<16x32xf32> -> vector<16x32xf32>
    %c0_5 = arith.constant 0 : index
    %c0_6 = arith.constant 0 : index
    %c0_7 = arith.constant 0 : index
    %7 = vector.load %arg4[%c0_5, %c0_6, %c0_7] : memref<1x1x32xf32, #tpu.memory_space<vmem>>, vector<1x1x32xf32>
    %8 = vector.shape_cast %7 : vector<1x1x32xf32> to vector<1x32xf32>
    %9 = vector.broadcast %8 : vector<1x32xf32> to vector<16x32xf32>
    %10 = arith.addf %6, %9 : vector<16x32xf32>
    %c0_8 = arith.constant 0 : index
    %c0_9 = arith.constant 0 : index
    %c0_10 = arith.constant 0 : index
    %11 = vector.load %arg2[%c0_8, %c0_9, %c0_10] : memref<1x16x32xf32, #tpu.memory_space<vmem>>, vector<1x16x32xf32>
    %12 = vector.shape_cast %11 : vector<1x16x32xf32> to vector<16x32xf32>
    %13 = arith.addf %10, %12 : vector<16x32xf32>
    %cst_11 = arith.constant 0.000000e+00 : f32
    %14 = vector.broadcast %cst_11 : f32 to vector<16x32xf32>
    %15 = arith.maximumf %13, %14 : vector<16x32xf32>
    %c0_12 = arith.constant 0 : index
    %c0_13 = arith.constant 0 : index
    %c0_14 = arith.constant 0 : index
    %16 = vector.load %arg5[%c0_12, %c0_13, %c0_14] : memref<1x32x32xf32, #tpu.memory_space<vmem>>, vector<1x32x32xf32>
    %17 = vector.shape_cast %16 : vector<1x32x32xf32> to vector<32x32xf32>
    %cst_15 = arith.constant dense<0.000000e+00> : vector<16x32xf32>
    %18 = tpu.matmul %15, %17, %cst_15 {dimension_numbers = #tpu.dot_dimension_numbers<[1], [0], [0], [1], [0, 0, 1, 1], [], []>} : vector<16x32xf32>, vector<32x32xf32>, vector<16x32xf32> -> vector<16x32xf32>
    %c0_16 = arith.constant 0 : index
    %c0_17 = arith.constant 0 : index
    %c0_18 = arith.constant 0 : index
    %19 = vector.load %arg6[%c0_16, %c0_17, %c0_18] : memref<1x1x32xf32, #tpu.memory_space<vmem>>, vector<1x1x32xf32>
    %20 = vector.shape_cast %19 : vector<1x1x32xf32> to vector<1x32xf32>
    %21 = vector.broadcast %20 : vector<1x32xf32> to vector<16x32xf32>
    %22 = arith.addf %18, %21 : vector<16x32xf32>
    %cst_19 = arith.constant 0.000000e+00 : f32
    %23 = vector.broadcast %cst_19 : f32 to vector<16x32xf32>
    %24 = arith.maximumf %22, %23 : vector<16x32xf32>
    %c0_20 = arith.constant 0 : index
    %c0_21 = arith.constant 0 : index
    %c0_22 = arith.constant 0 : index
    %25 = vector.load %arg7[%c0_20, %c0_21, %c0_22] : memref<1x32x256xf32, #tpu.memory_space<vmem>>, vector<1x32x256xf32>
    %26 = vector.shape_cast %25 : vector<1x32x256xf32> to vector<32x256xf32>
    %cst_23 = arith.constant dense<0.000000e+00> : vector<16x256xf32>
    %27 = tpu.matmul %24, %26, %cst_23 {dimension_numbers = #tpu.dot_dimension_numbers<[1], [0], [0], [1], [0, 0, 1, 1], [], []>} : vector<16x32xf32>, vector<32x256xf32>, vector<16x256xf32> -> vector<16x256xf32>
    %c0_24 = arith.constant 0 : index
    %c0_25 = arith.constant 0 : index
    %c0_26 = arith.constant 0 : index
    %28 = vector.load %arg8[%c0_24, %c0_25, %c0_26] : memref<1x1x256xf32, #tpu.memory_space<vmem>>, vector<1x1x256xf32>
    %29 = vector.shape_cast %28 : vector<1x1x256xf32> to vector<1x256xf32>
    %30 = vector.broadcast %29 : vector<1x256xf32> to vector<16x256xf32>
    %31 = arith.addf %27, %30 : vector<16x256xf32>
    %32 = vector.extract_strided_slice %31 {offsets = [0, 0], sizes = [16, 8], strides = [1, 1]} : vector<16x256xf32> to vector<16x8xf32>
    %33 = vector.extract_strided_slice %31 {offsets = [0, 128], sizes = [16, 8], strides = [1, 1]} : vector<16x256xf32> to vector<16x8xf32>
    %34 = arith.subf %3, %32 : vector<16x8xf32>
    %cst_27 = arith.constant 0.000000e+00 : f32
    %35 = vector.broadcast %cst_27 : f32 to vector<16x8xf32>
    %36 = arith.subf %35, %33 : vector<16x8xf32>
    %37 = math.exp %36 : vector<16x8xf32>
    %38 = arith.mulf %34, %37 : vector<16x8xf32>
    %c0_28 = arith.constant 0 : index
    %c0_29 = arith.constant 0 : index
    %39 = vector.load %arg15[%c0_28, %c0_29] : memref<16x8xf32, #tpu.memory_space<vmem>>, vector<16x8xf32>
    %40 = arith.addf %39, %33 : vector<16x8xf32>
    %c0_30 = arith.constant 0 : index
    %c0_31 = arith.constant 0 : index
    %41 = vector.load %arg15[%c0_30, %c0_31] : memref<16x8xf32, #tpu.memory_space<vmem>>, vector<16x8xf32>
    tpu.vector_store %arg15[%c0_30, %c0_31], %40 {strides = array<i32>} : memref<16x8xf32, #tpu.memory_space<vmem>>, vector<16x8xf32>,
    %cst_32 = arith.constant dense<0.000000e+00> : vector<8xf32>
    %42 = vector.multi_reduction <add>, %38, %cst_32 [0] : vector<16x8xf32> to vector<8xf32>
    %43 = vector.shape_cast %42 : vector<8xf32> to vector<1x8xf32>
    %44 = arith.mulf %38, %38 : vector<16x8xf32>
    %cst_33 = arith.constant dense<0.000000e+00> : vector<8xf32>
    %45 = vector.multi_reduction <add>, %44, %cst_33 [0] : vector<16x8xf32> to vector<8xf32>
    %46 = vector.shape_cast %45 : vector<8xf32> to vector<1x8xf32>
    %cst_34 = arith.constant 6.250000e-02 : f32
    %47 = vector.broadcast %cst_34 : f32 to vector<1x8xf32>
    %48 = arith.mulf %43, %47 : vector<1x8xf32>
    %cst_35 = arith.constant 6.250000e-02 : f32
    %49 = vector.broadcast %cst_35 : f32 to vector<1x8xf32>
    %50 = arith.mulf %46, %49 : vector<1x8xf32>
    %51 = arith.mulf %48, %48 : vector<1x8xf32>
    %52 = arith.subf %50, %51 : vector<1x8xf32>
    %cst_36 = arith.constant 9.99999974E-6 : f32
    %53 = vector.broadcast %cst_36 : f32 to vector<1x8xf32>
    %54 = arith.addf %52, %53 : vector<1x8xf32>
    %55 = vector.broadcast %48 : vector<1x8xf32> to vector<16x8xf32>
    %56 = arith.subf %38, %55 : vector<16x8xf32>
    %57 = math.rsqrt %54 : vector<1x8xf32>
    %58 = vector.broadcast %57 : vector<1x8xf32> to vector<16x8xf32>
    %59 = arith.mulf %56, %58 : vector<16x8xf32>
    %c0_37 = arith.constant 0 : index
    %c0_38 = arith.constant 0 : index
    %c0_39 = arith.constant 0 : index
    %60 = vector.load %arg9[%c0_37, %c0_38, %c0_39] : memref<1x1x8xf32, #tpu.memory_space<vmem>>, vector<1x1x8xf32>
    %61 = vector.shape_cast %60 : vector<1x1x8xf32> to vector<1x8xf32>
    %62 = vector.broadcast %61 : vector<1x8xf32> to vector<16x8xf32>
    %63 = arith.mulf %62, %59 : vector<16x8xf32>
    %c0_40 = arith.constant 0 : index
    %c0_41 = arith.constant 0 : index
    %c0_42 = arith.constant 0 : index
    %64 = vector.load %arg11[%c0_40, %c0_41, %c0_42] : memref<1x1x8xf32, #tpu.memory_space<vmem>>, vector<1x1x8xf32>
    %65 = vector.shape_cast %64 : vector<1x1x8xf32> to vector<1x8xf32>
    %66 = vector.broadcast %65 : vector<1x8xf32> to vector<16x8xf32>
    %67 = arith.addf %63, %66 : vector<16x8xf32>
    %c0_43 = arith.constant 0 : index
    %c0_44 = arith.constant 0 : index
    %68 = vector.load %arg16[%c0_43, %c0_44] : memref<1x8xf32, #tpu.memory_space<vmem>>, vector<1x8xf32>
    %c0_45 = arith.constant 0 : index
    %c0_46 = arith.constant 0 : index
    %c0_47 = arith.constant 0 : index
    %69 = vector.load %arg10[%c0_45, %c0_46, %c0_47] : memref<1x1x8xf32, #tpu.memory_space<vmem>>, vector<1x1x8xf32>
    %70 = vector.shape_cast %69 : vector<1x1x8xf32> to vector<1x8xf32>
    %71 = math.log %54 : vector<1x8xf32>
    %cst_48 = arith.constant 5.000000e-01 : f32
    %72 = vector.broadcast %cst_48 : f32 to vector<1x8xf32>
    %73 = arith.mulf %72, %71 : vector<1x8xf32>
    %74 = arith.subf %70, %73 : vector<1x8xf32>
    %75 = arith.addf %68, %74 : vector<1x8xf32>
    %c0_49 = arith.constant 0 : index
    %c0_50 = arith.constant 0 : index
    %76 = vector.load %arg16[%c0_49, %c0_50] : memref<1x8xf32, #tpu.memory_space<vmem>>, vector<1x8xf32>
    tpu.vector_store %arg16[%c0_49, %c0_50], %75 {strides = array<i32>} : memref<1x8xf32, #tpu.memory_space<vmem>>, vector<1x8xf32>,
    %c0_51 = arith.constant 0 : index
    %c0_52 = arith.constant 0 : index
    %77 = vector.load %arg14[%c0_51, %c0_52] : memref<16x8xf32, #tpu.memory_space<vmem>>, vector<16x8xf32>
    tpu.vector_store %arg14[%c0_51, %c0_52], %67 {strides = array<i32>} : memref<16x8xf32, #tpu.memory_space<vmem>>, vector<16x8xf32>,
    %c2_i32 = arith.constant 2 : i32
    %78 = arith.cmpi eq, %arg0, %c2_i32 : i32
    %79 = arith.extui %78 : i1 to i32
    %c0_i32_53 = arith.constant 0 : i32
    %80 = arith.cmpi ne, %79, %c0_i32_53 : i32
    scf.if %80 {
      %c0_54 = arith.constant 0 : index
      %c0_55 = arith.constant 0 : index
      %81 = vector.load %arg12[%c0_54, %c0_55] : memref<16x8xf32, #tpu.memory_space<vmem>>, vector<16x8xf32>
      tpu.vector_store %arg12[%c0_54, %c0_55], %67 {strides = array<i32>} : memref<16x8xf32, #tpu.memory_space<vmem>>, vector<16x8xf32>,
      %c0_56 = arith.constant 0 : index
      %c0_57 = arith.constant 0 : index
      %82 = vector.load %arg16[%c0_56, %c0_57] : memref<1x8xf32, #tpu.memory_space<vmem>>, vector<1x8xf32>
      %cst_58 = arith.constant dense<0.000000e+00> : vector<1xf32>
      %83 = vector.multi_reduction <add>, %82, %cst_58 [1] : vector<1x8xf32> to vector<1xf32>
      %84 = vector.shape_cast %83 : vector<1xf32> to vector<1x1xf32>
      %c0_59 = arith.constant 0 : index
      %c0_60 = arith.constant 0 : index
      %85 = vector.load %arg15[%c0_59, %c0_60] : memref<16x8xf32, #tpu.memory_space<vmem>>, vector<16x8xf32>
      %cst_61 = arith.constant dense<0.000000e+00> : vector<16xf32>
      %86 = vector.multi_reduction <add>, %85, %cst_61 [1] : vector<16x8xf32> to vector<16xf32>
      %87 = vector.shape_cast %86 : vector<16xf32> to vector<16x1xf32>
      %88 = vector.broadcast %84 : vector<1x1xf32> to vector<16x1xf32>
      %89 = arith.subf %88, %87 : vector<16x1xf32>
      %c0_62 = arith.constant 0 : index
      %c0_63 = arith.constant 0 : index
      %90 = vector.load %arg13[%c0_62, %c0_63] : memref<16x1xf32, #tpu.memory_space<vmem>>, vector<16x1xf32>
      tpu.vector_store %arg13[%c0_62, %c0_63], %89 {strides = array<i32>} : memref<16x1xf32, #tpu.memory_space<vmem>>, vector<16x1xf32>,
    } else {
    }
    return
  }
  func.func @transform_0(%arg0: i32) -> (i32, i32) {
    %c0_i32 = arith.constant 0 : i32
    %c0_i32_0 = arith.constant 0 : i32
    %c0_i32_1 = arith.constant 0 : i32
    return %c0_i32, %c0_i32_0 : i32, i32
  }
  func.func @transform_1(%arg0: i32) -> (i32, i32, i32) {
    %c0_i32 = arith.constant 0 : i32
    %c0_i32_0 = arith.constant 0 : i32
    %c0_i32_1 = arith.constant 0 : i32
    return %arg0, %c0_i32, %c0_i32_0 : i32, i32, i32
  }
  func.func @transform_2(%arg0: i32) -> (i32, i32, i32) {
    %c0_i32 = arith.constant 0 : i32
    %c0_i32_0 = arith.constant 0 : i32
    %c0_i32_1 = arith.constant 0 : i32
    return %arg0, %c0_i32, %c0_i32_0 : i32, i32, i32
  }
  func.func @transform_3(%arg0: i32) -> (i32, i32, i32) {
    %c0_i32 = arith.constant 0 : i32
    %c0_i32_0 = arith.constant 0 : i32
    %c0_i32_1 = arith.constant 0 : i32
    return %arg0, %c0_i32, %c0_i32_0 : i32, i32, i32
  }
  func.func @transform_4(%arg0: i32) -> (i32, i32, i32) {
    %c0_i32 = arith.constant 0 : i32
    %c0_i32_0 = arith.constant 0 : i32
    %c0_i32_1 = arith.constant 0 : i32
    return %arg0, %c0_i32, %c0_i32_0 : i32, i32, i32
  }
  func.func @transform_5(%arg0: i32) -> (i32, i32, i32) {
    %c0_i32 = arith.constant 0 : i32
    %c0_i32_0 = arith.constant 0 : i32
    %c0_i32_1 = arith.constant 0 : i32
    return %arg0, %c0_i32, %c0_i32_0 : i32, i32, i32
  }
  func.func @transform_6(%arg0: i32) -> (i32, i32, i32) {
    %c0_i32 = arith.constant 0 : i32
    %c0_i32_0 = arith.constant 0 : i32
    %c0_i32_1 = arith.constant 0 : i32
    return %arg0, %c0_i32, %c0_i32_0 : i32, i32, i32
  }
  func.func @transform_7(%arg0: i32) -> (i32, i32, i32) {
    %c0_i32 = arith.constant 0 : i32
    %c0_i32_0 = arith.constant 0 : i32
    %c0_i32_1 = arith.constant 0 : i32
    return %arg0, %c0_i32, %c0_i32_0 : i32, i32, i32
  }
  func.func @transform_8(%arg0: i32) -> (i32, i32, i32) {
    %c0_i32 = arith.constant 0 : i32
    %c0_i32_0 = arith.constant 0 : i32
    %c0_i32_1 = arith.constant 0 : i32
    return %arg0, %c0_i32, %c0_i32_0 : i32, i32, i32
  }
  func.func @transform_9(%arg0: i32) -> (i32, i32, i32) {
    %c0_i32 = arith.constant 0 : i32
    %c0_i32_0 = arith.constant 0 : i32
    %c0_i32_1 = arith.constant 0 : i32
    return %arg0, %c0_i32, %c0_i32_0 : i32, i32, i32
  }
  func.func @transform_10(%arg0: i32) -> (i32, i32, i32) {
    %c0_i32 = arith.constant 0 : i32
    %c0_i32_0 = arith.constant 0 : i32
    %c0_i32_1 = arith.constant 0 : i32
    return %arg0, %c0_i32, %c0_i32_0 : i32, i32, i32
  }
  func.func @transform_11(%arg0: i32) -> (i32, i32) {
    %c0_i32 = arith.constant 0 : i32
    %c0_i32_0 = arith.constant 0 : i32
    %c0_i32_1 = arith.constant 0 : i32
    return %c0_i32, %c0_i32_0 : i32, i32
  }
  func.func @transform_12(%arg0: i32) -> (i32, i32) {
    %c0_i32 = arith.constant 0 : i32
    %c0_i32_0 = arith.constant 0 : i32
    %c0_i32_1 = arith.constant 0 : i32
    return %c0_i32, %c0_i32_0 : i32, i32
  }
}

</mosaic_0001>

<llo_original>
// kernel: _lambda_.1
$region0: #{_lambda_.1}
  #allocation0 [shape = 'u32[]', space=smem, size = 0x4, offset = 0x4, fixed_abs, tag = 'smem constant byte address 0x4 - core index']
  #allocation1 [shape = 'u32[144,128]{1,0:T(1,128)}', space=vmem, size = 0x12000, scoped, tag = 'internal scratch']
  #allocation2 [shape = 'f32[16,8]{1,0:T(8,128)}', space=vmem, size = 0x2000, scoped, tag = 'scratch operand']
  #allocation3 [shape = 'f32[16,8]{1,0:T(8,128)}', space=vmem, size = 0x2000, scoped, tag = 'scratch operand']
  #allocation4 [shape = 'f32[1,8]{1,0:T(1,128)}', space=vmem, size = 0x200, scoped, tag = 'scratch operand']
  %s0 = inlined_call_operand.vmem [shape: f32[16,8], index: 0, kind: input, shape index: {}]
  %s1 = inlined_call_operand.vmem [shape: f32[3,16,32], index: 1, kind: input, shape index: {}]
  %s2 = inlined_call_operand.vmem [shape: f32[3,8,32], index: 2, kind: input, shape index: {}]
  %s3 = inlined_call_operand.vmem [shape: f32[3,1,32], index: 3, kind: input, shape index: {}, may-alias: {3,5}]
  %s4 = inlined_call_operand.vmem [shape: f32[3,32,32], index: 4, kind: input, shape index: {}]
  %s5 = inlined_call_operand.vmem [shape: f32[3,1,32], index: 5, kind: input, shape index: {}, may-alias: {3,5}]
  %s6 = inlined_call_operand.hbm [shape: f32[3,32,256], index: 6, kind: input, shape index: {}]
  %s7 = inlined_call_operand.vmem [shape: f32[3,1,256], index: 7, kind: input, shape index: {}]
  %s8 = inlined_call_operand.vmem [shape: f32[3,1,8], index: 8, kind: input, shape index: {}]
  %s9 = inlined_call_operand.vmem [shape: f32[3,1,8], index: 9, kind: input, shape index: {}, may-alias: {9,10}]
  %s10 = inlined_call_operand.vmem [shape: f32[3,1,8], index: 10, kind: input, shape index: {}, may-alias: {9,10}]
  %s11 = inlined_call_operand.vmem [shape: f32[16,8], index: 11, kind: output, shape index: {0}]
  %s12 = inlined_call_operand.vmem [shape: f32[16,1], index: 12, kind: output, shape index: {1}]
  %13 = xla_tuple %s11, %s12
  %s14 = sld [smem:[#allocation0]]
  $region97: #{_lambda_.1} parent=0
    _
  %s16 = ssub.s32 1, %s14
  %s17 = scalar_select 0, %s16, %s14
  $region1: #{_lambda_.1} parent=0
    #allocation5 [shape = 'u8[65536]{0}', space=vmem, size = 0x10000, scoped, tag = 'input window, operand 6']
    #allocation6 [shape = 's32[2]{0}', space=sflag, size = 0x8, scoped, tag = 'scoped memory for _lambda_.1']
    %18 = vsyncpa [#allocation6], 0
    %s19 = scalar_lea.sflag [#allocation6], 1
    %20 = vsyncpa %s19, 0
    loop: start=0, step=1, limit=5
    $region2: #{_lambda_.1} parent=1 // loop_pre_header
      _
    $region3: #{_lambda_.1} parent=1 // loop_header
      %s22 = sphi 0, %s26
      %p23 = scmp.ge.s32.totalorder %s22, 5
      %s30 = sphi 0, %s30
      %s32 = sphi 0, %s30
      %s33 = sphi 0, %s32
      %s47 = sphi 0, %s33
      %s53 = sphi 0, %s55
      %s56 = sphi 0, %s53
      %s57 = sphi 0, %s56
      %s73 = sphi 0, %s57
      %s79 = sphi 0, %s81
      %s82 = sphi 0, %s79
      %s83 = sphi 0, %s82
      %s99 = sphi 0, %s83
      %s105 = sphi 0, %s107
      %s108 = sphi 0, %s105
      %s109 = sphi 0, %s108
      %s125 = sphi 0, %s109
      %s131 = sphi 0, %s133
      %s134 = sphi 0, %s131
      %s135 = sphi 0, %s134
      %s151 = sphi 0, %s135
      %s157 = sphi 0, %s159
      %s160 = sphi 0, %s157
      %s161 = sphi 0, %s160
      %s177 = sphi 0, %s161
      %s183 = sphi 0, %s185
      %s186 = sphi 0, %s183
      %s187 = sphi 0, %s186
      %s203 = sphi 0, %s187
      %s209 = sphi 0, %s211
      %s212 = sphi 0, %s209
      %s213 = sphi 0, %s212
      %s229 = sphi 0, %s213
      %s235 = sphi 0, %s237
      %s238 = sphi 0, %s235
      %s239 = sphi 0, %s238
      %s255 = sphi 0, %s239
      %s261 = sphi 0, %s263
      %s264 = sphi 0, %s261
      %s265 = sphi 0, %s264
      %s281 = sphi 0, %s265
      %s287 = sphi 0, %s289
      %s290 = sphi 0, %s287
      %s291 = sphi 0, %s290
      %s307 = sphi 0, %s291
      %s311 = sphi 0, %s311
      %s313 = sphi 0, %s311
      %s314 = sphi 0, %s313
      %s328 = sphi 0, %s314
      %s332 = sphi 0, %s332
      %s334 = sphi 0, %s332
      %s335 = sphi 0, %s334
      %s349 = sphi 0, %s335
    $region4: #{_lambda_.1} parent=1 // loop_header_branch
      %25 = sbr.rel (%p23) target = $region8
    $region5: #{_lambda_.1} parent=1 // loop_body
      %s27 = ssub.s32 %s22, 1
      %s28 = ssub.s32 %s22, 2
      %s29 = sadd.s32 %s22, 1
      %s31 = sadd.s32 %s30, 1
      %p34 = scmp.eq.s32.totalorder %s22, 2
      %p35 = scmp.ne.s32.totalorder %s30, %s32
      %p36 = scmp.eq.s32.totalorder %s22, 0
      %p37 = por %p35, %p36
      %p38 = scmp.ne.s32.totalorder %s30, %s32
      %p39 = scmp.eq.s32.totalorder %s27, 2
      %p40 = por %p38, %p39
      %p41 = scmp.ne.s32.totalorder %s32, %s33
      %p42 = scmp.eq.s32.totalorder %s27, 0
      %p43 = por %p41, %p42
      %p44 = scmp.ne.s32.totalorder %s32, %s33
      %p45 = scmp.eq.s32.totalorder %s28, 2
      %p46 = por %p44, %p45
      %p48 = scmp.ne.s32.totalorder %s33, %s47
      %p49 = scmp.eq.s32.totalorder %s28, 0
      %p50 = por %p48, %p49
      %s51 = ssub.s32 %s22, %s29
      %p52 = scmp.eq.s32.totalorder %s51, 0
      %s54 = sadd.s32 %s53, 1
      %s55 = scalar_select %p52, %s53, %s54
      %p58 = pneg %p52
      %p59 = scmp.eq.s32.totalorder %s22, 2
      %p60 = por %p58, %p59
      %p61 = scmp.ne.s32.totalorder %s53, %s56
      %p62 = scmp.eq.s32.totalorder %s22, 0
      %p63 = por %p61, %p62
      %p64 = scmp.ne.s32.totalorder %s53, %s56
      %p65 = scmp.eq.s32.totalorder %s27, 2
      %p66 = por %p64, %p65
      %p67 = scmp.ne.s32.totalorder %s56, %s57
      %p68 = scmp.eq.s32.totalorder %s27, 0
      %p69 = por %p67, %p68
      %p70 = scmp.ne.s32.totalorder %s56, %s57
      %p71 = scmp.eq.s32.totalorder %s28, 2
      %p72 = por %p70, %p71
      %p74 = scmp.ne.s32.totalorder %s57, %s73
      %p75 = scmp.eq.s32.totalorder %s28, 0
      %p76 = por %p74, %p75
      %s77 = ssub.s32 %s22, %s29
      %p78 = scmp.eq.s32.totalorder %s77, 0
      %s80 = sadd.s32 %s79, 1
      %s81 = scalar_select %p78, %s79, %s80
      %p84 = pneg %p78
      %p85 = scmp.eq.s32.totalorder %s22, 2
      %p86 = por %p84, %p85
      %p87 = scmp.ne.s32.totalorder %s79, %s82
      %p88 = scmp.eq.s32.totalorder %s22, 0
      %p89 = por %p87, %p88
      %p90 = scmp.ne.s32.totalorder %s79, %s82
      %p91 = scmp.eq.s32.totalorder %s27, 2
      %p92 = por %p90, %p91
      %p93 = scmp.ne.s32.totalorder %s82, %s83
      %p94 = scmp.eq.s32.totalorder %s27, 0
      %p95 = por %p93, %p94
      %p96 = scmp.ne.s32.totalorder %s82, %s83
      %p97 = scmp.eq.s32.totalorder %s28, 2
      %p98 = por %p96, %p97
      %p100 = scmp.ne.s32.totalorder %s83, %s99
      %p101 = scmp.eq.s32.totalorder %s28, 0
      %p102 = por %p100, %p101
      %s103 = ssub.s32 %s22, %s29
      %p104 = scmp.eq.s32.totalorder %s103, 0
      %s106 = sadd.s32 %s105, 1
      %s107 = scalar_select %p104, %s105, %s106
      %p110 = pneg %p104
      %p111 = scmp.eq.s32.totalorder %s22, 2
      %p112 = por %p110, %p111
      %p113 = scmp.ne.s32.totalorder %s105, %s108
      %p114 = scmp.eq.s32.totalorder %s22, 0
      %p115 = por %p113, %p114
      %p116 = scmp.ne.s32.totalorder %s105, %s108
      %p117 = scmp.eq.s32.totalorder %s27, 2
      %p118 = por %p116, %p117
      %p119 = scmp.ne.s32.totalorder %s108, %s109
      %p120 = scmp.eq.s32.totalorder %s27, 0
      %p121 = por %p119, %p120
      %p122 = scmp.ne.s32.totalorder %s108, %s109
      %p123 = scmp.eq.s32.totalorder %s28, 2
      %p124 = por %p122, %p123
      %p126 = scmp.ne.s32.totalorder %s109, %s125
      %p127 = scmp.eq.s32.totalorder %s28, 0
      %p128 = por %p126, %p127
      %s129 = ssub.s32 %s22, %s29
      %p130 = scmp.eq.s32.totalorder %s129, 0
      %s132 = sadd.s32 %s131, 1
      %s133 = scalar_select %p130, %s131, %s132
      %p136 = pneg %p130
      %p137 = scmp.eq.s32.totalorder %s22, 2
      %p138 = por %p136, %p137
      %p139 = scmp.ne.s32.totalorder %s131, %s134
      %p140 = scmp.eq.s32.totalorder %s22, 0
      %p141 = por %p139, %p140
      %p142 = scmp.ne.s32.totalorder %s131, %s134
      %p143 = scmp.eq.s32.totalorder %s27, 2
      %p144 = por %p142, %p143
      %p145 = scmp.ne.s32.totalorder %s134, %s135
      %p146 = scmp.eq.s32.totalorder %s27, 0
      %p147 = por %p145, %p146
      %p148 = scmp.ne.s32.totalorder %s134, %s135
      %p149 = scmp.eq.s32.totalorder %s28, 2
      %p150 = por %p148, %p149
      %p152 = scmp.ne.s32.totalorder %s135, %s151
      %p153 = scmp.eq.s32.totalorder %s28, 0
      %p154 = por %p152, %p153
      %s155 = ssub.s32 %s22, %s29
      %p156 = scmp.eq.s32.totalorder %s155, 0
      %s158 = sadd.s32 %s157, 1
      %s159 = scalar_select %p156, %s157, %s158
      %p162 = pneg %p156
      %p163 = scmp.eq.s32.totalorder %s22, 2
      %p164 = por %p162, %p163
      %p165 = scmp.ne.s32.totalorder %s157, %s160
      %p166 = scmp.eq.s32.totalorder %s22, 0
      %p167 = por %p165, %p166
      %p168 = scmp.ne.s32.totalorder %s157, %s160
      %p169 = scmp.eq.s32.totalorder %s27, 2
      %p170 = por %p168, %p169
      %p171 = scmp.ne.s32.totalorder %s160, %s161
      %p172 = scmp.eq.s32.totalorder %s27, 0
      %p173 = por %p171, %p172
      %p174 = scmp.ne.s32.totalorder %s160, %s161
      %p175 = scmp.eq.s32.totalorder %s28, 2
      %p176 = por %p174, %p175
      %p178 = scmp.ne.s32.totalorder %s161, %s177
      %p179 = scmp.eq.s32.totalorder %s28, 0
      %p180 = por %p178, %p179
      %s181 = ssub.s32 %s22, %s29
      %p182 = scmp.eq.s32.totalorder %s181, 0
      %s184 = sadd.s32 %s183, 1
      %s185 = scalar_select %p182, %s183, %s184
      %p188 = pneg %p182
      %p189 = scmp.eq.s32.totalorder %s22, 2
      %p190 = por %p188, %p189
      %p191 = scmp.ne.s32.totalorder %s183, %s186
      %p192 = scmp.eq.s32.totalorder %s22, 0
      %p193 = por %p191, %p192
      %p194 = scmp.ne.s32.totalorder %s183, %s186
      %p195 = scmp.eq.s32.totalorder %s27, 2
      %p196 = por %p194, %p195
      %p197 = scmp.ne.s32.totalorder %s186, %s187
      %p198 = scmp.eq.s32.totalorder %s27, 0
      %p199 = por %p197, %p198
      %p200 = scmp.ne.s32.totalorder %s186, %s187
      %p201 = scmp.eq.s32.totalorder %s28, 2
      %p202 = por %p200, %p201
      %p204 = scmp.ne.s32.totalorder %s187, %s203
      %p205 = scmp.eq.s32.totalorder %s28, 0
      %p206 = por %p204, %p205
      %s207 = ssub.s32 %s22, %s29
      %p208 = scmp.eq.s32.totalorder %s207, 0
      %s210 = sadd.s32 %s209, 1
      %s211 = scalar_select %p208, %s209, %s210
      %p214 = pneg %p208
      %p215 = scmp.eq.s32.totalorder %s22, 2
      %p216 = por %p214, %p215
      %p217 = scmp.ne.s32.totalorder %s209, %s212
      %p218 = scmp.eq.s32.totalorder %s22, 0
      %p219 = por %p217, %p218
      %p220 = scmp.ne.s32.totalorder %s209, %s212
      %p221 = scmp.eq.s32.totalorder %s27, 2
      %p222 = por %p220, %p221
      %p223 = scmp.ne.s32.totalorder %s212, %s213
      %p224 = scmp.eq.s32.totalorder %s27, 0
      %p225 = por %p223, %p224
      %p226 = scmp.ne.s32.totalorder %s212, %s213
      %p227 = scmp.eq.s32.totalorder %s28, 2
      %p228 = por %p226, %p227
      %p230 = scmp.ne.s32.totalorder %s213, %s229
      %p231 = scmp.eq.s32.totalorder %s28, 0
      %p232 = por %p230, %p231
      %s233 = ssub.s32 %s22, %s29
      %p234 = scmp.eq.s32.totalorder %s233, 0
      %s236 = sadd.s32 %s235, 1
      %s237 = scalar_select %p234, %s235, %s236
      %p240 = pneg %p234
      %p241 = scmp.eq.s32.totalorder %s22, 2
      %p242 = por %p240, %p241
      %p243 = scmp.ne.s32.totalorder %s235, %s238
      %p244 = scmp.eq.s32.totalorder %s22, 0
      %p245 = por %p243, %p244
      %p246 = scmp.ne.s32.totalorder %s235, %s238
      %p247 = scmp.eq.s32.totalorder %s27, 2
      %p248 = por %p246, %p247
      %p249 = scmp.ne.s32.totalorder %s238, %s239
      %p250 = scmp.eq.s32.totalorder %s27, 0
      %p251 = por %p249, %p250
      %p252 = scmp.ne.s32.totalorder %s238, %s239
      %p253 = scmp.eq.s32.totalorder %s28, 2
      %p254 = por %p252, %p253
      %p256 = scmp.ne.s32.totalorder %s239, %s255
      %p257 = scmp.eq.s32.totalorder %s28, 0
      %p258 = por %p256, %p257
      %s259 = ssub.s32 %s22, %s29
      %p260 = scmp.eq.s32.totalorder %s259, 0
      %s262 = sadd.s32 %s261, 1
      %s263 = scalar_select %p260, %s261, %s262
      %p266 = pneg %p260
      %p267 = scmp.eq.s32.totalorder %s22, 2
      %p268 = por %p266, %p267
      %p269 = scmp.ne.s32.totalorder %s261, %s264
      %p270 = scmp.eq.s32.totalorder %s22, 0
      %p271 = por %p269, %p270
      %p272 = scmp.ne.s32.totalorder %s261, %s264
      %p273 = scmp.eq.s32.totalorder %s27, 2
      %p274 = por %p272, %p273
      %p275 = scmp.ne.s32.totalorder %s264, %s265
      %p276 = scmp.eq.s32.totalorder %s27, 0
      %p277 = por %p275, %p276
      %p278 = scmp.ne.s32.totalorder %s264, %s265
      %p279 = scmp.eq.s32.totalorder %s28, 2
      %p280 = por %p278, %p279
      %p282 = scmp.ne.s32.totalorder %s265, %s281
      %p283 = scmp.eq.s32.totalorder %s28, 0
      %p284 = por %p282, %p283
      %s285 = ssub.s32 %s22, %s29
      %p286 = scmp.eq.s32.totalorder %s285, 0
      %s288 = sadd.s32 %s287, 1
      %s289 = scalar_select %p286, %s287, %s288
      %p292 = pneg %p286
      %p293 = scmp.eq.s32.totalorder %s22, 2
      %p294 = por %p292, %p293
      %p295 = scmp.ne.s32.totalorder %s287, %s290
      %p296 = scmp.eq.s32.totalorder %s22, 0
      %p297 = por %p295, %p296
      %p298 = scmp.ne.s32.totalorder %s287, %s290
      %p299 = scmp.eq.s32.totalorder %s27, 2
      %p300 = por %p298, %p299
      %p301 = scmp.ne.s32.totalorder %s290, %s291
      %p302 = scmp.eq.s32.totalorder %s27, 0
      %p303 = por %p301, %p302
      %p304 = scmp.ne.s32.totalorder %s290, %s291
      %p305 = scmp.eq.s32.totalorder %s28, 2
      %p306 = por %p304, %p305
      %p308 = scmp.ne.s32.totalorder %s291, %s307
      %p309 = scmp.eq.s32.totalorder %s28, 0
      %p310 = por %p308, %p309
      %s312 = sadd.s32 %s311, 1
      %p315 = scmp.eq.s32.totalorder %s22, 2
      %p316 = scmp.ne.s32.totalorder %s311, %s313
      %p317 = scmp.eq.s32.totalorder %s22, 0
      %p318 = por %p316, %p317
      %p319 = scmp.ne.s32.totalorder %s311, %s313
      %p320 = scmp.eq.s32.totalorder %s27, 2
      %p321 = por %p319, %p320
      %p322 = scmp.ne.s32.totalorder %s313, %s314
      %p323 = scmp.eq.s32.totalorder %s27, 0
      %p324 = por %p322, %p323
      %p325 = scmp.ne.s32.totalorder %s313, %s314
      %p326 = scmp.eq.s32.totalorder %s28, 2
      %p327 = por %p325, %p326
      %p329 = scmp.ne.s32.totalorder %s314, %s328
      %p330 = scmp.eq.s32.totalorder %s28, 0
      %p331 = por %p329, %p330
      %s333 = sadd.s32 %s332, 1
      %p336 = scmp.eq.s32.totalorder %s22, 2
      %p337 = scmp.ne.s32.totalorder %s332, %s334
      %p338 = scmp.eq.s32.totalorder %s22, 0
      %p339 = por %p337, %p338
      %p340 = scmp.ne.s32.totalorder %s332, %s334
      %p341 = scmp.eq.s32.totalorder %s27, 2
      %p342 = por %p340, %p341
      %p343 = scmp.ne.s32.totalorder %s334, %s335
      %p344 = scmp.eq.s32.totalorder %s27, 0
      %p345 = por %p343, %p344
      %p346 = scmp.ne.s32.totalorder %s334, %s335
      %p347 = scmp.eq.s32.totalorder %s28, 2
      %p348 = por %p346, %p347
      %p350 = scmp.ne.s32.totalorder %s335, %s349
      %p351 = scmp.eq.s32.totalorder %s28, 0
      %p352 = por %p350, %p351
      %p353 = scmp.le.s32.totalorder 1, %s22
      %p354 = scmp.lt.s32.totalorder %s22, 4
      %p355 = pnand %p353, %p354
      %p356 = pneg %p355
      // Predicated region
      $region9: #{_lambda_.1} parent=5 // pred_check
        _
      $region10: #{_lambda_.1} parent=5 // pred_check_branch
        %358 = sbr.rel (%p355) target = $region12
      $region11: #{_lambda_.1} parent=5 // pred_region
        %s359 = ssub.s32 %s22, 1
        // Predicated region
        $region13: #{_lambda_.1} parent=11 // pred_check
          %p360 = pneg %p43
        $region14: #{_lambda_.1} parent=11 // pred_check_branch
          %362 = sbr.rel (%p360) target = $region16
        $region15: #{_lambda_.1} parent=11 // pred_region
          _
        $region16: #{_lambda_.1} parent=11 // pred_fallthru
          _
      $region12: #{_lambda_.1} parent=5 // pred_fallthru
        _
      %p363 = scmp.lt.s32.totalorder %s22, 3
      // Predicated region
      $region17: #{_lambda_.1} parent=5 // pred_check
        %p364 = pneg %p363
      $region18: #{_lambda_.1} parent=5 // pred_check_branch
        %366 = sbr.rel (%p364) target = $region20
      $region19: #{_lambda_.1} parent=5 // pred_region
        // Predicated region
        $region21: #{_lambda_.1} parent=19 // pred_check
          %p367 = pneg %p63
        $region22: #{_lambda_.1} parent=19 // pred_check_branch
          %369 = sbr.rel (%p367) target = $region24
        $region23: #{_lambda_.1} parent=19 // pred_region
          %p370 = scmp.lt.s32.totalorder %s22, 2
          %s371 = scalar_select %p370, %s22, 2
          %s372 = smul.addr %s371, 2
          %s373 = smul.addr %s372, 8
          %s374 = scalar_lea.vmem %s1, %s373
        $region24: #{_lambda_.1} parent=19 // pred_fallthru
          _
        // Predicated region
        $region25: #{_lambda_.1} parent=19 // pred_check
          %p375 = pneg %p89
        $region26: #{_lambda_.1} parent=19 // pred_check_branch
          %377 = sbr.rel (%p375) target = $region28
        $region27: #{_lambda_.1} parent=19 // pred_region
          %p378 = scmp.lt.s32.totalorder %s22, 2
          %s379 = scalar_select %p378, %s22, 2
          %s380 = smul.addr %s379, 8
          %s381 = scalar_lea.vmem %s2, %s380
        $region28: #{_lambda_.1} parent=19 // pred_fallthru
          _
        // Predicated region
        $region29: #{_lambda_.1} parent=19 // pred_check
          %p382 = pneg %p115
        $region30: #{_lambda_.1} parent=19 // pred_check_branch
          %384 = sbr.rel (%p382) target = $region32
        $region31: #{_lambda_.1} parent=19 // pred_region
          %p385 = scmp.lt.s32.totalorder %s22, 2
          %s386 = scalar_select %p385, %s22, 2
          %s387 = scalar_lea.vmem %s3, %s386
        $region32: #{_lambda_.1} parent=19 // pred_fallthru
          _
        // Predicated region
        $region33: #{_lambda_.1} parent=19 // pred_check
          %p388 = pneg %p141
        $region34: #{_lambda_.1} parent=19 // pred_check_branch
          %390 = sbr.rel (%p388) target = $region36
        $region35: #{_lambda_.1} parent=19 // pred_region
          %p391 = scmp.lt.s32.totalorder %s22, 2
          %s392 = scalar_select %p391, %s22, 2
          %s393 = smul.addr %s392, 4
          %s394 = smul.addr %s393, 8
          %s395 = scalar_lea.vmem %s4, %s394
        $region36: #{_lambda_.1} parent=19 // pred_fallthru
          _
        // Predicated region
        $region37: #{_lambda_.1} parent=19 // pred_check
          %p396 = pneg %p167
        $region38: #{_lambda_.1} parent=19 // pred_check_branch
          %398 = sbr.rel (%p396) target = $region40
        $region39: #{_lambda_.1} parent=19 // pred_region
          %p399 = scmp.lt.s32.totalorder %s22, 2
          %s400 = scalar_select %p399, %s22, 2
          %s401 = scalar_lea.vmem %s5, %s400
        $region40: #{_lambda_.1} parent=19 // pred_fallthru
          _
        // Predicated region
        $region41: #{_lambda_.1} parent=19 // pred_check
          %p402 = pneg %p193
        $region42: #{_lambda_.1} parent=19 // pred_check_branch
          %404 = sbr.rel (%p402) target = $region44
        $region43: #{_lambda_.1} parent=19 // pred_region
          %s405 = sand.u32 %s183, 1
          %s406 = scalar_lea.sflag [#allocation6], %s405
          %s407 = sand.u32 %s183, 1
          %s408 = smul.addr %s407, 64
          %s409 = scalar_lea.vmem [#allocation5], %s408
          %s411 = ssub.s32 1024, 1024
          %412 = vsyncadd %s406, %s411
          %s413 = smul.addr %s22, 8
          %s414 = smul.addr %s413, 128
          %s415 = scalar_lea.hbm %s6, %s414
          %s416 = sshll.u32 %s409, 4
          %s417 = int_to_ptr.vmem [resolvable:$true] %s416
          %422 = dma.hbm_to_vmem [thread:$0]  %s415, 1024, %s417, %s406, 256, 256, 16
        $region44: #{_lambda_.1} parent=19 // pred_fallthru
          _
        // Predicated region
        $region45: #{_lambda_.1} parent=19 // pred_check
          %p423 = pneg %p219
        $region46: #{_lambda_.1} parent=19 // pred_check_branch
          %425 = sbr.rel (%p423) target = $region48
        $region47: #{_lambda_.1} parent=19 // pred_region
          %p426 = scmp.lt.s32.totalorder %s22, 2
          %s427 = scalar_select %p426, %s22, 2
          %s428 = smul.addr %s427, 2
          %s429 = scalar_lea.vmem %s7, %s428
        $region48: #{_lambda_.1} parent=19 // pred_fallthru
          _
        // Predicated region
        $region49: #{_lambda_.1} parent=19 // pred_check
          %p430 = pneg %p245
        $region50: #{_lambda_.1} parent=19 // pred_check_branch
          %432 = sbr.rel (%p430) target = $region52
        $region51: #{_lambda_.1} parent=19 // pred_region
          %p433 = scmp.lt.s32.totalorder %s22, 2
          %s434 = scalar_select %p433, %s22, 2
          %s435 = scalar_lea.vmem %s8, %s434
        $region52: #{_lambda_.1} parent=19 // pred_fallthru
          _
        // Predicated region
        $region53: #{_lambda_.1} parent=19 // pred_check
          %p436 = pneg %p271
        $region54: #{_lambda_.1} parent=19 // pred_check_branch
          %438 = sbr.rel (%p436) target = $region56
        $region55: #{_lambda_.1} parent=19 // pred_region
          %p439 = scmp.lt.s32.totalorder %s22, 2
          %s440 = scalar_select %p439, %s22, 2
          %s441 = scalar_lea.vmem %s9, %s440
        $region56: #{_lambda_.1} parent=19 // pred_fallthru
          _
        // Predicated region
        $region57: #{_lambda_.1} parent=19 // pred_check
          %p442 = pneg %p297
        $region58: #{_lambda_.1} parent=19 // pred_check_branch
          %444 = sbr.rel (%p442) target = $region60
        $region59: #{_lambda_.1} parent=19 // pred_region
          %p445 = scmp.lt.s32.totalorder %s22, 2
          %s446 = scalar_select %p445, %s22, 2
          %s447 = scalar_lea.vmem %s10, %s446
        $region60: #{_lambda_.1} parent=19 // pred_fallthru
          _
      $region20: #{_lambda_.1} parent=5 // pred_fallthru
        _
      %p448 = scmp.le.s32.totalorder 1, %s22
      %p449 = scmp.lt.s32.totalorder %s22, 4
      %p450 = pnand %p448, %p449
      %p451 = pneg %p450
      // Predicated region
      $region61: #{_lambda_.1} parent=5 // pred_check
        _
      $region62: #{_lambda_.1} parent=5 // pred_check_branch
        %453 = sbr.rel (%p450) target = $region64
      $region63: #{_lambda_.1} parent=5 // pred_region
        %s454 = ssub.s32 %s22, 1
        %s455 = sand.u32 %s186, 1
        %s456 = scalar_lea.sflag [#allocation6], %s455
        %s457 = sand.u32 %s186, 1
        %s458 = smul.addr %s457, 64
        %s459 = scalar_lea.vmem [#allocation5], %s458
        // Predicated region
        $region65: #{_lambda_.1} parent=63 // pred_check
          %p460 = pneg %p199
        $region66: #{_lambda_.1} parent=63 // pred_check_branch
          %462 = sbr.rel (%p460) target = $region68
        $region67: #{_lambda_.1} parent=63 // pred_region
          %463 = dma.done %s456, 1024
        $region68: #{_lambda_.1} parent=63 // pred_fallthru
          _
        %p464 = pneg %p43
        %p465 = pneg %p40
        %p466 = scmp.lt.s32.totalorder %s27, 2
        %s467 = scalar_select %p466, %s27, 2
        %s468 = smul.addr %s467, 2
        %s469 = smul.addr %s468, 8
        %s470 = scalar_lea.vmem %s1, %s469
        %p471 = pneg %p69
        %p472 = pneg %p66
        %p473 = scmp.lt.s32.totalorder %s27, 2
        %s474 = scalar_select %p473, %s27, 2
        %s475 = smul.addr %s474, 8
        %s476 = scalar_lea.vmem %s2, %s475
        %p477 = pneg %p95
        %p478 = pneg %p92
        %p479 = scmp.lt.s32.totalorder %s27, 2
        %s480 = scalar_select %p479, %s27, 2
        %s481 = scalar_lea.vmem %s3, %s480
        %p482 = pneg %p121
        %p483 = pneg %p118
        %p484 = scmp.lt.s32.totalorder %s27, 2
        %s485 = scalar_select %p484, %s27, 2
        %s486 = smul.addr %s485, 4
        %s487 = smul.addr %s486, 8
        %s488 = scalar_lea.vmem %s4, %s487
        %p489 = pneg %p147
        %p490 = pneg %p144
        %p491 = scmp.lt.s32.totalorder %s27, 2
        %s492 = scalar_select %p491, %s27, 2
        %s493 = scalar_lea.vmem %s5, %s492
        %p494 = pneg %p173
        %p495 = pneg %p170
        %s496 = sand.u32 %s186, 1
        %s497 = scalar_lea.sflag [#allocation6], %s496
        %s498 = sand.u32 %s186, 1
        %s499 = smul.addr %s498, 64
        %s500 = scalar_lea.vmem [#allocation5], %s499
        %p501 = pneg %p199
        %p502 = pneg %p196
        %p503 = scmp.lt.s32.totalorder %s27, 2
        %s504 = scalar_select %p503, %s27, 2
        %s505 = smul.addr %s504, 2
        %s506 = scalar_lea.vmem %s7, %s505
        %p507 = pneg %p225
        %p508 = pneg %p222
        %p509 = scmp.lt.s32.totalorder %s27, 2
        %s510 = scalar_select %p509, %s27, 2
        %s511 = scalar_lea.vmem %s8, %s510
        %p512 = pneg %p251
        %p513 = pneg %p248
        %p514 = scmp.lt.s32.totalorder %s27, 2
        %s515 = scalar_select %p514, %s27, 2
        %s516 = scalar_lea.vmem %s9, %s515
        %p517 = pneg %p277
        %p518 = pneg %p274
        %p519 = scmp.lt.s32.totalorder %s27, 2
        %s520 = scalar_select %p519, %s27, 2
        %s521 = scalar_lea.vmem %s10, %s520
        %p522 = pneg %p303
        %p523 = pneg %p300
        %p524 = pneg %p324
        %p525 = pneg %p321
        %p526 = pneg %p345
        %p527 = pneg %p342
        %p528 = scmp.lt.s32.totalorder %s27, 2
        %s529 = scalar_select %p528, %s27, 2
        %s530 = smul.addr %s529, 2
        %s531 = smul.addr %s530, 8
        %s532 = scalar_lea.vmem %s1, %s531
        %p533 = scmp.lt.s32.totalorder %s27, 2
        %s534 = scalar_select %p533, %s27, 2
        %s535 = smul.addr %s534, 8
        %s536 = scalar_lea.vmem %s2, %s535
        %p537 = scmp.lt.s32.totalorder %s27, 2
        %s538 = scalar_select %p537, %s27, 2
        %s539 = scalar_lea.vmem %s3, %s538
        %p540 = scmp.lt.s32.totalorder %s27, 2
        %s541 = scalar_select %p540, %s27, 2
        %s542 = smul.addr %s541, 4
        %s543 = smul.addr %s542, 8
        %s544 = scalar_lea.vmem %s4, %s543
        %p545 = scmp.lt.s32.totalorder %s27, 2
        %s546 = scalar_select %p545, %s27, 2
        %s547 = scalar_lea.vmem %s5, %s546
        %p548 = scmp.lt.s32.totalorder %s27, 2
        %s549 = scalar_select %p548, %s27, 2
        %s550 = smul.addr %s549, 2
        %s551 = scalar_lea.vmem %s7, %s550
        %p552 = scmp.lt.s32.totalorder %s27, 2
        %s553 = scalar_select %p552, %s27, 2
        %s554 = scalar_lea.vmem %s8, %s553
        %p555 = scmp.lt.s32.totalorder %s27, 2
        %s556 = scalar_select %p555, %s27, 2
        %s557 = scalar_lea.vmem %s9, %s556
        %p558 = scmp.lt.s32.totalorder %s27, 2
        %s559 = scalar_select %p558, %s27, 2
        %s560 = scalar_lea.vmem %s10, %s559
        %p561 = scmp.eq.s32.totalorder %s27, 0
        // Predicated region
        $region69: #{_lambda_.1} parent=63 // pred_check
          %p562 = pneg %p561
        $region70: #{_lambda_.1} parent=63 // pred_check_branch
          %564 = sbr.rel (%p562) target = $region72
        $region71: #{_lambda_.1} parent=63 // pred_region
          %v565 = vld [vmem:[%s0] sm:$0xff]
          %v566 = vld [vmem:[%s0 + $0x8] sm:$0xff]
          %vm567 = vcmask 64512
          %568 = vst.msk [vmem:[#allocation2] sm:$0xff] %vm567, %v565
          %569 = vst.msk [vmem:[#allocation2 + $0x8] sm:$0xff] %vm567, %v566
          %570 = vst.msk [vmem:[#allocation3] sm:$0xff] %vm567, 0.0
          %571 = vst.msk [vmem:[#allocation3 + $0x8] sm:$0xff] %vm567, 0.0
          %vm572 = vcmask 57344
          %573 = vst.msk [vmem:[#allocation4] sm:$0x1] %vm572, 0.0
        $region72: #{_lambda_.1} parent=63 // pred_fallthru
          _
        %v574 = vld [vmem:[#allocation2] sm:$0xff]
        %v575 = vld [vmem:[#allocation2 + $0x8] sm:$0xff]
        %v576 = vld [vmem:[%s536] sm:$0xff]
        %v577 = vld [vmem:[%s539] sm:$0x1]
        %v579 = vlaneseq
        %v580 = vshrl.u32 %v579, 7
        %v581 = vsub.s32 0, %v580
        %v582 = vrot.slane %v577, %v581
        %vm584 = vcmask 64512
        %v586 = vsel %vm584, %v574, 0
        %v589 = vsel %vm584, %v575, 0
        %591 = vmatprep.subr.mxu0 0.0
        %592 = vmatpush1.msra.mxu0 %v576
        %593 = vmatprep.subr.mxu0 0.0
        %594 = vmatpush1.msra.mxu0 0.0
        %595 = vmatprep.subr.mxu0 0.0
        %596 = vmatpush1.msra.mxu0 0.0
        %597 = vmatprep.subr.mxu0 0.0
        %598 = vmatpush1.msra.mxu0 0.0
        %599 = vmatprep.subr.mxu0 0.0
        %600 = vmatpush1.msra.mxu0 0.0
        %601 = vmatprep.subr.mxu0 0.0
        %602 = vmatpush1.msra.mxu0 0.0
        %603 = vmatprep.subr.mxu0 0.0
        %604 = vmatpush1.msra.mxu0 0.0
        %605 = vmatprep.subr.mxu0 0.0
        %606 = vmatpush1.msra.mxu0 0.0
        %607 = vmatprep.subr.mxu0 0.0
        %608 = vmatpush1.msra.mxu0 0.0
        %609 = vmatprep.subr.mxu0 0.0
        %610 = vmatpush1.msra.mxu0 0.0
        %611 = vmatprep.subr.mxu0 0.0
        %612 = vmatpush1.msra.mxu0 0.0
        %613 = vmatprep.subr.mxu0 0.0
        %614 = vmatpush1.msra.mxu0 0.0
        %615 = vmatprep.subr.mxu0 0.0
        %616 = vmatpush1.msra.mxu0 0.0
        %617 = vmatprep.subr.mxu0 0.0
        %618 = vmatpush1.msra.mxu0 0.0
        %619 = vmatprep.subr.mxu0 0.0
        %620 = vmatpush1.msra.mxu0 0.0
        %621 = vmatprep.subr.mxu0 0.0
        %622 = vmatpush1.msra.mxu0 0.0
        %623 = vmatprep.subr.mxu0 0.0
        %624 = vmatpush1.msra.mxu0 0.0
        %625 = vmatprep.subr.mxu0 0.0
        %626 = vmatpush1.msra.mxu0 0.0
        %627 = vmatprep.subr.mxu0 0.0
        %628 = vmatpush1.msra.mxu0 0.0
        %629 = vmatprep.subr.mxu0 0.0
        %630 = vmatpush1.msra.mxu0 0.0
        %631 = vmatprep.subr.mxu0 0.0
        %632 = vmatpush1.msra.mxu0 0.0
        %633 = vmatprep.subr.mxu0 0.0
        %634 = vmatpush1.msra.mxu0 0.0
        %635 = vmatprep.subr.mxu0 0.0
        %636 = vmatpush1.msra.mxu0 0.0
        %637 = vmatprep.subr.mxu0 0.0
        %638 = vmatpush1.msra.mxu0 0.0
        %639 = vmatprep.subr.mxu0 0.0
        %640 = vmatpush1.msra.mxu0 0.0
        %641 = vmatprep.subr.mxu0 0.0
        %642 = vmatpush1.msra.mxu0 0.0
        %643 = vmatprep.subr.mxu0 0.0
        %644 = vmatpush1.msra.mxu0 0.0
        %645 = vmatprep.subr.mxu0 0.0
        %646 = vmatpush1.msra.mxu0 0.0
        %647 = vmatprep.subr.mxu0 0.0
        %648 = vmatpush1.msra.mxu0 0.0
        %649 = vmatprep.subr.mxu0 0.0
        %650 = vmatpush1.msra.mxu0 0.0
        %651 = vmatprep.subr.mxu0 0.0
        %652 = vmatpush1.msra.mxu0 0.0
        %653 = vmatprep.subr.mxu0 0.0
        %654 = vmatpush1.msra.mxu0 0.0
        %655 = vmatprep.mubr.f32.mxu0 0.0
        %656 = vmatmul.mubr.f32.gmra.mrb[0].mxu0 %v586
        %v657 = vpop.f32.mrb[0].mxu0
        %v658 = vadd.f32 %v582, %v657
        %v659 = vpop.f32.mrb[0].mxu0
        %660 = vmatprep.mubr.f32.mxu0 0.0
        %661 = vmatmul.mubr.f32.gmra.mrb[0].mxu0 %v589
        %v662 = vpop.f32.mrb[0].mxu0
        %v663 = vadd.f32 %v582, %v662
        %v664 = vpop.f32.mrb[0].mxu0
        %665 = vdwg.mxu0
        %v666 = vld [vmem:[%s532] sm:$0xff]
        %v667 = vld [vmem:[%s532 + $0x8] sm:$0xff]
        %v668 = vadd.f32 %v658, %v666
        %v669 = vadd.f32 %v663, %v667
        %v670 = vmax.f32 %v668, 0.0
        %v671 = vmax.f32 %v669, 0.0
        %v672 = vld [vmem:[%s544] sm:$0xff]
        %v673 = vld [vmem:[%s544 + $0x8] sm:$0xff]
        %v674 = vld [vmem:[%s544 + $0x10] sm:$0xff]
        %v675 = vld [vmem:[%s544 + $0x18] sm:$0xff]
        %v676 = vld [vmem:[%s547] sm:$0x1]
        %v678 = vlaneseq
        %v679 = vshrl.u32 %v678, 7
        %v680 = vsub.s32 0, %v679
        %v681 = vrot.slane %v676, %v680
        %vm683 = vcmask 261120
        %v685 = vsel %vm683, %v670, 0
        %v688 = vsel %vm683, %v671, 0
        %690 = vmatprep.subr.mxu0 0.0
        %691 = vmatpush1.msra.mxu0 %v672
        %692 = vmatprep.subr.mxu0 0.0
        %693 = vmatpush1.msra.mxu0 %v673
        %694 = vmatprep.subr.mxu0 0.0
        %695 = vmatpush1.msra.mxu0 %v674
        %696 = vmatprep.subr.mxu0 0.0
        %697 = vmatpush1.msra.mxu0 %v675
        %698 = vmatprep.subr.mxu0 0.0
        %699 = vmatpush1.msra.mxu0 0.0
        %700 = vmatprep.subr.mxu0 0.0
        %701 = vmatpush1.msra.mxu0 0.0
        %702 = vmatprep.subr.mxu0 0.0
        %703 = vmatpush1.msra.mxu0 0.0
        %704 = vmatprep.subr.mxu0 0.0
        %705 = vmatpush1.msra.mxu0 0.0
        %706 = vmatprep.subr.mxu0 0.0
        %707 = vmatpush1.msra.mxu0 0.0
        %708 = vmatprep.subr.mxu0 0.0
        %709 = vmatpush1.msra.mxu0 0.0
        %710 = vmatprep.subr.mxu0 0.0
        %711 = vmatpush1.msra.mxu0 0.0
        %712 = vmatprep.subr.mxu0 0.0
        %713 = vmatpush1.msra.mxu0 0.0
        %714 = vmatprep.subr.mxu0 0.0
        %715 = vmatpush1.msra.mxu0 0.0
        %716 = vmatprep.subr.mxu0 0.0
        %717 = vmatpush1.msra.mxu0 0.0
        %718 = vmatprep.subr.mxu0 0.0
        %719 = vmatpush1.msra.mxu0 0.0
        %720 = vmatprep.subr.mxu0 0.0
        %721 = vmatpush1.msra.mxu0 0.0
        %722 = vmatprep.subr.mxu0 0.0
        %723 = vmatpush1.msra.mxu0 0.0
        %724 = vmatprep.subr.mxu0 0.0
        %725 = vmatpush1.msra.mxu0 0.0
        %726 = vmatprep.subr.mxu0 0.0
        %727 = vmatpush1.msra.mxu0 0.0
        %728 = vmatprep.subr.mxu0 0.0
        %729 = vmatpush1.msra.mxu0 0.0
        %730 = vmatprep.subr.mxu0 0.0
        %731 = vmatpush1.msra.mxu0 0.0
        %732 = vmatprep.subr.mxu0 0.0
        %733 = vmatpush1.msra.mxu0 0.0
        %734 = vmatprep.subr.mxu0 0.0
        %735 = vmatpush1.msra.mxu0 0.0
        %736 = vmatprep.subr.mxu0 0.0
        %737 = vmatpush1.msra.mxu0 0.0
        %738 = vmatprep.subr.mxu0 0.0
        %739 = vmatpush1.msra.mxu0 0.0
        %740 = vmatprep.subr.mxu0 0.0
        %741 = vmatpush1.msra.mxu0 0.0
        %742 = vmatprep.subr.mxu0 0.0
        %743 = vmatpush1.msra.mxu0 0.0
        %744 = vmatprep.subr.mxu0 0.0
        %745 = vmatpush1.msra.mxu0 0.0
        %746 = vmatprep.subr.mxu0 0.0
        %747 = vmatpush1.msra.mxu0 0.0
        %748 = vmatprep.subr.mxu0 0.0
        %749 = vmatpush1.msra.mxu0 0.0
        %750 = vmatprep.subr.mxu0 0.0
        %751 = vmatpush1.msra.mxu0 0.0
        %752 = vmatprep.subr.mxu0 0.0
        %753 = vmatpush1.msra.mxu0 0.0
        %754 = vmatprep.mubr.f32.mxu0 0.0
        %755 = vmatmul.mubr.f32.gmra.mrb[0].mxu0 %v685
        %v756 = vpop.f32.mrb[0].mxu0
        %v757 = vadd.f32 %v681, %v756
        %v758 = vpop.f32.mrb[0].mxu0
        %759 = vmatprep.mubr.f32.mxu0 0.0
        %760 = vmatmul.mubr.f32.gmra.mrb[0].mxu0 %v688
        %v761 = vpop.f32.mrb[0].mxu0
        %v762 = vadd.f32 %v681, %v761
        %v763 = vpop.f32.mrb[0].mxu0
        %764 = vdwg.mxu0
        %v765 = vmax.f32 %v757, 0.0
        %v766 = vmax.f32 %v762, 0.0
        %v767 = vld [vmem:[%s459] sm:$0xff]
        %v768 = vld [vmem:[%s459 + $0x8] sm:$0xff]
        %v769 = vld [vmem:[%s459 + $0x10] sm:$0xff]
        %v770 = vld [vmem:[%s459 + $0x18] sm:$0xff]
        %v771 = vld [vmem:[%s459 + $0x20] sm:$0xff]
        %v772 = vld [vmem:[%s459 + $0x28] sm:$0xff]
        %v773 = vld [vmem:[%s459 + $0x30] sm:$0xff]
        %v774 = vld [vmem:[%s459 + $0x38] sm:$0xff]
        %v775 = vld [vmem:[%s551] sm:$0x3]
        %v777 = vlaneseq
        %v778 = vshrl.u32 %v777, 7
        %v779 = vsub.s32 0, %v778
        %v780 = vrot.slane %v775, %v779
        %v781 = vlaneseq
        %v782 = vshrl.u32 %v781, 7
        %v783 = vsub.s32 1, %v782
        %v784 = vrot.slane %v775, %v783
        %v788 = vsel %vm683, %v765, 0
        %v791 = vsel %vm683, %v766, 0
        %793 = vmatprep.subr.mxu0 %v768
        %794 = vmatpush1.msra.mxu0 %v767
        %795 = vmatprep.subr.mxu0 %v770
        %796 = vmatpush1.msra.mxu0 %v769
        %797 = vmatprep.subr.mxu0 %v772
        %798 = vmatpush1.msra.mxu0 %v771
        %799 = vmatprep.subr.mxu0 %v774
        %800 = vmatpush1.msra.mxu0 %v773
        %801 = vmatprep.subr.mxu0 0.0
        %802 = vmatpush1.msra.mxu0 0.0
        %803 = vmatprep.subr.mxu0 0.0
        %804 = vmatpush1.msra.mxu0 0.0
        %805 = vmatprep.subr.mxu0 0.0
        %806 = vmatpush1.msra.mxu0 0.0
        %807 = vmatprep.subr.mxu0 0.0
        %808 = vmatpush1.msra.mxu0 0.0
        %809 = vmatprep.subr.mxu0 0.0
        %810 = vmatpush1.msra.mxu0 0.0
        %811 = vmatprep.subr.mxu0 0.0
        %812 = vmatpush1.msra.mxu0 0.0
        %813 = vmatprep.subr.mxu0 0.0
        %814 = vmatpush1.msra.mxu0 0.0
        %815 = vmatprep.subr.mxu0 0.0
        %816 = vmatpush1.msra.mxu0 0.0
        %817 = vmatprep.subr.mxu0 0.0
        %818 = vmatpush1.msra.mxu0 0.0
        %819 = vmatprep.subr.mxu0 0.0
        %820 = vmatpush1.msra.mxu0 0.0
        %821 = vmatprep.subr.mxu0 0.0
        %822 = vmatpush1.msra.mxu0 0.0
        %823 = vmatprep.subr.mxu0 0.0
        %824 = vmatpush1.msra.mxu0 0.0
        %825 = vmatprep.subr.mxu0 0.0
        %826 = vmatpush1.msra.mxu0 0.0
        %827 = vmatprep.subr.mxu0 0.0
        %828 = vmatpush1.msra.mxu0 0.0
        %829 = vmatprep.subr.mxu0 0.0
        %830 = vmatpush1.msra.mxu0 0.0
        %831 = vmatprep.subr.mxu0 0.0
        %832 = vmatpush1.msra.mxu0 0.0
        %833 = vmatprep.subr.mxu0 0.0
        %834 = vmatpush1.msra.mxu0 0.0
        %835 = vmatprep.subr.mxu0 0.0
        %836 = vmatpush1.msra.mxu0 0.0
        %837 = vmatprep.subr.mxu0 0.0
        %838 = vmatpush1.msra.mxu0 0.0
        %839 = vmatprep.subr.mxu0 0.0
        %840 = vmatpush1.msra.mxu0 0.0
        %841 = vmatprep.subr.mxu0 0.0
        %842 = vmatpush1.msra.mxu0 0.0
        %843 = vmatprep.subr.mxu0 0.0
        %844 = vmatpush1.msra.mxu0 0.0
        %845 = vmatprep.subr.mxu0 0.0
        %846 = vmatpush1.msra.mxu0 0.0
        %847 = vmatprep.subr.mxu0 0.0
        %848 = vmatpush1.msra.mxu0 0.0
        %849 = vmatprep.subr.mxu0 0.0
        %850 = vmatpush1.msra.mxu0 0.0
        %851 = vmatprep.subr.mxu0 0.0
        %852 = vmatpush1.msra.mxu0 0.0
        %853 = vmatprep.subr.mxu0 0.0
        %854 = vmatpush1.msra.mxu0 0.0
        %855 = vmatprep.subr.mxu0 0.0
        %856 = vmatpush1.msra.mxu0 0.0
        %857 = vmatprep.mubr.f32.mxu0 0.0
        %858 = vmatmul.mubr.f32.gmra.mrb[0].mxu0 %v788
        %v859 = vpop.f32.mrb[0].mxu0
        %v860 = vadd.f32 %v780, %v859
        %v861 = vpop.f32.mrb[0].mxu0
        %v862 = vadd.f32 %v784, %v861
        %863 = vmatprep.mubr.f32.mxu0 0.0
        %864 = vmatmul.mubr.f32.gmra.mrb[0].mxu0 %v791
        %v865 = vpop.f32.mrb[0].mxu0
        %v866 = vadd.f32 %v780, %v865
        %v867 = vpop.f32.mrb[0].mxu0
        %v868 = vadd.f32 %v784, %v867
        %869 = vdwg.mxu0
        %v870 = vsub.f32 %v574, %v860
        %v871 = vsub.f32 %v575, %v866
        %v872 = vsub.f32 0.0, %v862
        %v873 = vsub.f32 0.0, %v868
        %v874 = vmul.f32 %v872, 1.442695
        %v875 = vpow.pop %v874
        %v876 = vmul.f32 %v873, 1.442695
        %v877 = vpow.pop %v876
        %v878 = vmul.f32 %v870, %v875
        %v879 = vmul.f32 %v871, %v877
        %v880 = vld [vmem:[#allocation3] sm:$0xff]
        %v881 = vld [vmem:[#allocation3 + $0x8] sm:$0xff]
        %v882 = vadd.f32 %v880, %v862
        %v883 = vadd.f32 %v881, %v868
        %884 = vst.msk [vmem:[#allocation3] sm:$0xff] %vm584, %v882
        %885 = vst.msk [vmem:[#allocation3 + $0x8] sm:$0xff] %vm584, %v883
        %v886 = vsel %vm584, %v878, 0.0
        %v887 = vsel %vm584, %v879, 0.0
        %v888 = vadd.f32 %v886, %v887
        %v889 = vrot.slane %v888, 4
        %v890 = vadd.f32 %v888, %v889
        %v891 = vrot.slane %v890, 2
        %v892 = vadd.f32 %v890, %v891
        %v893 = vrot.slane %v892, 1
        %v894 = vadd.f32 %v892, %v893
        %v895 = vmul.f32 %v878, %v878
        %v896 = vmul.f32 %v879, %v879
        %v897 = vsel %vm584, %v895, 0.0
        %v898 = vsel %vm584, %v896, 0.0
        %v899 = vadd.f32 %v897, %v898
        %v900 = vrot.slane %v899, 4
        %v901 = vadd.f32 %v899, %v900
        %v902 = vrot.slane %v901, 2
        %v903 = vadd.f32 %v901, %v902
        %v904 = vrot.slane %v903, 1
        %v905 = vadd.f32 %v903, %v904
        %v906 = vmul.f32 %v894, 0.0625
        %v907 = vmul.f32 %v905, 0.0625
        %v908 = vmul.f32 %v906, %v906
        %v909 = vsub.f32 %v907, %v908
        %v910 = vadd.f32 %v909, 1e-05
        %v911 = vsub.f32 %v878, %v906
        %v912 = vsub.f32 %v879, %v906
        %v913 = vrsqrt.pop %v910
        %v914 = vmul.f32 %v911, %v913
        %v915 = vmul.f32 %v912, %v913
        %v916 = vld [vmem:[%s554] sm:$0x1]
        %v918 = vlaneseq
        %v919 = vshrl.u32 %v918, 7
        %v920 = vsub.s32 0, %v919
        %v921 = vrot.slane %v916, %v920
        %v923 = vmul.f32 %v921, %v914
        %v924 = vmul.f32 %v921, %v915
        %v925 = vld [vmem:[%s560] sm:$0x1]
        %v927 = vlaneseq
        %v928 = vshrl.u32 %v927, 7
        %v929 = vsub.s32 0, %v928
        %v930 = vrot.slane %v925, %v929
        %v932 = vadd.f32 %v923, %v930
        %v933 = vadd.f32 %v924, %v930
        %v934 = vld [vmem:[#allocation4] sm:$0x1]
        %v935 = vld [vmem:[%s557] sm:$0x1]
        %v936 = vlog2.pop %v910
        %v937 = vmul.f32 %v936, 0.6931472
        %v938 = vmul.f32 %v937, 0.5
        %v939 = vsub.f32 %v935, %v938
        %v940 = vadd.f32 %v934, %v939
        %vm941 = vcmask 57344
        %942 = vst.msk [vmem:[#allocation4] sm:$0x1] %vm941, %v940
        %943 = vst.msk [vmem:[#allocation2] sm:$0xff] %vm584, %v932
        %944 = vst.msk [vmem:[#allocation2 + $0x8] sm:$0xff] %vm584, %v933
        %p945 = scmp.eq.s32.totalorder %s27, 2
        // Predicated region
        $region73: #{_lambda_.1} parent=63 // pred_check
          %p946 = pneg %p945
        $region74: #{_lambda_.1} parent=63 // pred_check_branch
          %948 = sbr.rel (%p946) target = $region76
        $region75: #{_lambda_.1} parent=63 // pred_region
          %949 = vst.msk [vmem:[%s11] sm:$0xff] %vm584, %v932
          %950 = vst.msk [vmem:[%s11 + $0x8] sm:$0xff] %vm584, %v933
          %v951 = vld [vmem:[#allocation4] sm:$0x1]
          %v952 = vsel %vm941, %v951, 0.0
          %953 = vadd.xlane.f32.xlu0 %v952
          %v954 = vpop.xlane.xlu0 %953
          %v955 = vld [vmem:[#allocation3] sm:$0xff]
          %v956 = vld [vmem:[#allocation3 + $0x8] sm:$0xff]
          %v957 = vsel %vm584, %v955, 0.0
          %958 = vadd.xlane.f32.xlu0 %v957
          %v959 = vpop.xlane.xlu0 %958
          %v960 = vsel %vm584, %v956, 0.0
          %961 = vadd.xlane.f32.xlu0 %v960
          %v962 = vpop.xlane.xlu0 %961
          %v963 = vlaneseq
          %v964 = vshrl.u32 %v963, 7
          %v965 = vsub.s32 0, %v964
          %v966 = vrot.slane %v954, %v965
          %v967 = vsub.f32 %v966, %v959
          %v968 = vsub.f32 %v966, %v962
          %vm969 = vcmask 7168
          %970 = vst.msk [vmem:[%s12] sm:$0xff] %vm969, %v967
          %971 = vst.msk [vmem:[%s12 + $0x8] sm:$0xff] %vm969, %v968
        $region76: #{_lambda_.1} parent=63 // pred_fallthru
          _
        // Predicated region
        $region77: #{_lambda_.1} parent=63 // pred_check
          %p972 = pneg %p321
        $region78: #{_lambda_.1} parent=63 // pred_check_branch
          %974 = sbr.rel (%p972) target = $region80
        $region79: #{_lambda_.1} parent=63 // pred_region
          _
        $region80: #{_lambda_.1} parent=63 // pred_fallthru
          _
        // Predicated region
        $region81: #{_lambda_.1} parent=63 // pred_check
          %p975 = pneg %p342
        $region82: #{_lambda_.1} parent=63 // pred_check_branch
          %977 = sbr.rel (%p975) target = $region84
        $region83: #{_lambda_.1} parent=63 // pred_region
          _
        $region84: #{_lambda_.1} parent=63 // pred_fallthru
          _
        // Predicated region
        $region85: #{_lambda_.1} parent=63 // pred_check
          %p978 = pneg %p321
        $region86: #{_lambda_.1} parent=63 // pred_check_branch
          %980 = sbr.rel (%p978) target = $region88
        $region87: #{_lambda_.1} parent=63 // pred_region
          _
        $region88: #{_lambda_.1} parent=63 // pred_fallthru
          _
        // Predicated region
        $region89: #{_lambda_.1} parent=63 // pred_check
          %p981 = pneg %p342
        $region90: #{_lambda_.1} parent=63 // pred_check_branch
          %983 = sbr.rel (%p981) target = $region92
        $region91: #{_lambda_.1} parent=63 // pred_region
          _
        $region92: #{_lambda_.1} parent=63 // pred_fallthru
          _
      $region64: #{_lambda_.1} parent=5 // pred_fallthru
        _
      %p984 = scmp.le.s32.totalorder 2, %s22
      // Predicated region
      $region93: #{_lambda_.1} parent=5 // pred_check
        %p985 = pneg %p984
      $region94: #{_lambda_.1} parent=5 // pred_check_branch
        %987 = sbr.rel (%p985) target = $region96
      $region95: #{_lambda_.1} parent=5 // pred_region
        %s988 = ssub.s32 %s22, 2
      $region96: #{_lambda_.1} parent=5 // pred_fallthru
        _
    $region6: #{_lambda_.1} parent=1 // loop_footer
      %s26 = sadd.s32 1, %s22
    $region7: #{_lambda_.1} parent=1 // loop_footer_branch
      %21 = sbr.rel target = $region3
    $region8: #{_lambda_.1} parent=1 // loop_exit
      _
    %989 = vsyncpa [#allocation6], 1
    %s990 = scalar_lea.sflag [#allocation6], 1
    %991 = vsyncpa %s990, 1

</llo_original>
